<compile_context>
chip_gen: v7x
topology: tpu7x:2x2x1
jax: 0.10.0
libtpu: 0.0.40
codegen_flags: <defaults>
</compile_context>

<pallas_src>
import jax
import jax.numpy as jnp
from jax.experimental import pallas as pl
from jax.experimental.pallas import tpu as pltpu

N_EMBED = 384      # C (hardcoded in the PyTorch module)
HEAD_SIZE = 64     # head_size chosen for the example
SEQ_LEN = 8        # T (<= BLOCK_SIZE=256; causal mask built in-kernel via iota)
BATCH = 2          # B


def head_kernel(x_ref, wqkv_ref, o_ref):
    # x_ref:    (B*T, C)  bf16   -- all batch rows merged (lane-dense M dim)
    # wqkv_ref: (C, 3H)   bf16   -- fused [W_q | W_k | W_v]
    # o_ref:    (B, T, H) f32
    B, T, H = o_ref.shape
    C = x_ref.shape[1]
    # NOTE: the PyTorch code normalizes by C ** -0.5 (n_embed), not head_size.
    scale = C ** (-0.5)

    # Single MXU pass for all three projections over all B*T rows.
    qkv = jnp.dot(x_ref[...], wqkv_ref[...],
                  preferred_element_type=jnp.float32)            # (B*T, 3H) f32
    qkv = qkv.reshape(B, T, 3 * H)                               # split major dim

    q = qkv[..., 0 * H:1 * H].astype(jnp.bfloat16)               # (B, T, H)
    k = qkv[..., 1 * H:2 * H].astype(jnp.bfloat16)
    v = qkv[..., 2 * H:3 * H].astype(jnp.bfloat16)

    # Batched q @ k^T contracting the last dims directly (no explicit .T).
    s = jnp.einsum("bth,bsh->bts", q, k,
                   preferred_element_type=jnp.float32) * scale   # (B, T, T)

    # Causal mask == torch.tril(ones(T, T)) == (row >= col); built once as
    # (T, T) and broadcast over batch by jnp.where.
    row = jax.lax.broadcasted_iota(jnp.int32, (T, T), 0)
    col = jax.lax.broadcasted_iota(jnp.int32, (T, T), 1)
    causal = (row >= col)[None]                                  # (1, T, T)
    s = jnp.where(causal, s, -jnp.inf)

    # Numerically stable softmax; denominator reciprocal runs on the EUP.
    s = s - jnp.max(s, axis=-1, keepdims=True)
    p = jnp.exp(s)
    p = p * pl.reciprocal(jnp.sum(p, axis=-1, keepdims=True), approx=True)

    out = jnp.einsum("bts,bsh->bth", p.astype(jnp.bfloat16), v,
                     preferred_element_type=jnp.float32)         # (B, T, H)
    o_ref[...] = out.astype(o_ref.dtype)


def head_forward(x, w_key, w_query, w_value):
    """x: (B, T, C) f32; w_*: (C, H) f32 (already transposed vs torch)."""
    B, T, C = x.shape
    H = w_key.shape[1]

    # Fuse projection weights into one lane-dense (C, 3H) bf16 operand and
    # merge batch/sequence so the projection M dimension is B*T.
    wqkv = jnp.concatenate([w_query, w_key, w_value], axis=1).astype(jnp.bfloat16)
    x2d = x.reshape(B * T, C).astype(jnp.bfloat16)

    return pl.pallas_call(
        head_kernel,
        out_shape=jax.ShapeDtypeStruct((B, T, H), jnp.float32),
        grid=(1,),
        in_specs=[
            pl.BlockSpec((B * T, C), lambda i: (0, 0)),
            pl.BlockSpec((C, 3 * H), lambda i: (0, 0)),
        ],
        out_specs=pl.BlockSpec((B, T, H), lambda i: (0, 0, 0)),
        compiler_params=pltpu.CompilerParams(
            dimension_semantics=("arbitrary",)),
    )(x2d, wqkv)
    # NOTE: for production multi-head attention, fuse all heads into one kernel
    # (output lane dim n_heads*H >= 128 for unmasked stores) and, with large B
    # on v7x, add a leading "parallel" batch grid axis to use both TensorCores.


def head_reference(x, w_key, w_query, w_value):
    """Pure-JAX f32 reference matching the PyTorch forward exactly."""
    B, T, C = x.shape
    k = x @ w_key          # (B, T, H)
    q = x @ w_query        # (B, T, H)
    v = x @ w_value        # (B, T, H)
    w = jnp.einsum("bth,bsh->bts", q, k) * (C ** -0.5)
    mask = jnp.tril(jnp.ones((T, T), dtype=bool))
    w = jnp.where(mask[None], w, -jnp.inf)
    weights = jax.nn.softmax(w, axis=-1)
    return jnp.einsum("bts,bsh->bth", weights, v)


if __name__ == "__main__":
    key = jax.random.PRNGKey(0)
    kx, kk, kq, kv = jax.random.split(key, 4)

    # Deterministic synthetic inputs / parameters.
    x = jax.random.normal(kx, (BATCH, SEQ_LEN, N_EMBED), dtype=jnp.float32)
    # nn.Linear default init scale ~ 1/sqrt(fan_in); stored as (C, H) = W_torch.T
    bound = 1.0 / (N_EMBED ** 0.5)
    w_key = jax.random.uniform(kk, (N_EMBED, HEAD_SIZE), jnp.float32, -bound, bound)
    w_query = jax.random.uniform(kq, (N_EMBED, HEAD_SIZE), jnp.float32, -bound, bound)
    w_value = jax.random.uniform(kv, (N_EMBED, HEAD_SIZE), jnp.float32, -bound, bound)

    fwd = jax.jit(head_forward)
    out = fwd(x, w_key, w_query, w_value)
    out = jax.block_until_ready(out)

    ref = head_reference(x, w_key, w_query, w_value)
    assert out.shape == (BATCH, SEQ_LEN, HEAD_SIZE)
    # bf16 MXU operands + approx EUP reciprocal => relaxed tolerance vs f32 ref.
    assert jnp.allclose(out, ref, atol=3e-2, rtol=3e-2), "mismatch vs reference"

    print("KERNEL_OK")
</pallas_src>

<mosaic_0001>
module attributes {stable_mosaic.version = 11 : i64} {
  func.func @head_kernel(%arg0: i32, %arg1: memref<16x384xbf16, #tpu.memory_space<vmem>>, %arg2: memref<384x192xbf16, #tpu.memory_space<vmem>>, %arg3: memref<2x8x64xf32, #tpu.memory_space<vmem>>) attributes {dimension_semantics = [#tpu.dimension_semantics<arbitrary>], iteration_bounds = array<i64: 1>, scalar_prefetch = 0 : i64, scratch_operands = 0 : i64, tpu.core_type = #tpu.core_type<tc>, window_params = [{pipeline_mode = #tpu.pipeline_mode<synchronous>, transform_indices = @transform_0, window_bounds = array<i64: 16, 384>}, {pipeline_mode = #tpu.pipeline_mode<synchronous>, transform_indices = @transform_1, window_bounds = array<i64: 384, 192>}, {pipeline_mode = #tpu.pipeline_mode<synchronous>, transform_indices = @transform_2, window_bounds = array<i64: 2, 8, 64>}]} {
    %c0 = arith.constant 0 : index
    %c0_0 = arith.constant 0 : index
    %0 = vector.load %arg1[%c0, %c0_0] : memref<16x384xbf16, #tpu.memory_space<vmem>>, vector<16x384xbf16>
    %c0_1 = arith.constant 0 : index
    %c0_2 = arith.constant 0 : index
    %1 = vector.load %arg2[%c0_1, %c0_2] : memref<384x192xbf16, #tpu.memory_space<vmem>>, vector<384x192xbf16>
    %cst = arith.constant dense<0.000000e+00> : vector<16x192xf32>
    %2 = tpu.matmul %0, %1, %cst {dimension_numbers = #tpu.dot_dimension_numbers<[1], [0], [0], [1], [0, 0, 1, 1], [], []>} : vector<16x384xbf16>, vector<384x192xbf16>, vector<16x192xf32> -> vector<16x192xf32>
    %3 = vector.shape_cast %2 : vector<16x192xf32> to vector<2x8x192xf32>
    %4 = vector.extract_strided_slice %3 {offsets = [0, 0, 0], sizes = [2, 8, 64], strides = [1, 1, 1]} : vector<2x8x192xf32> to vector<2x8x64xf32>
    %5 = arith.truncf %4 : vector<2x8x64xf32> to vector<2x8x64xbf16>
    %6 = vector.extract_strided_slice %3 {offsets = [0, 0, 64], sizes = [2, 8, 64], strides = [1, 1, 1]} : vector<2x8x192xf32> to vector<2x8x64xf32>
    %7 = arith.truncf %6 : vector<2x8x64xf32> to vector<2x8x64xbf16>
    %8 = vector.extract_strided_slice %3 {offsets = [0, 0, 128], sizes = [2, 8, 64], strides = [1, 1, 1]} : vector<2x8x192xf32> to vector<2x8x64xf32>
    %9 = arith.truncf %8 : vector<2x8x64xf32> to vector<2x8x64xbf16>
    "tpu.trace_start"() <{level = 10 : i32, message = "bth,bsh->bts"}> : () -> ()
    %cst_3 = arith.constant dense<0.000000e+00> : vector<2x8x8xf32>
    %10 = tpu.matmul %5, %7, %cst_3 {dimension_numbers = #tpu.dot_dimension_numbers<[2], [2], [1], [1], [0, 0, 0, 1, 1, 1], [0], [0]>} : vector<2x8x64xbf16>, vector<2x8x64xbf16>, vector<2x8x8xf32> -> vector<2x8x8xf32>
    "tpu.trace_stop"() : () -> ()
    %cst_4 = arith.constant 0.0510310382 : f32
    %11 = vector.broadcast %cst_4 : f32 to vector<2x8x8xf32>
    %12 = arith.mulf %10, %11 : vector<2x8x8xf32>
    %13 = tpu.iota {dimensions = array<i32: 0>} : vector<8x8xi32>
    %14 = tpu.iota {dimensions = array<i32: 1>} : vector<8x8xi32>
    %15 = arith.cmpi sge, %13, %14 : vector<8x8xi32>
    %16 = vector.shape_cast %15 : vector<8x8xi1> to vector<1x8x8xi1>
    %cst_5 = arith.constant 0xFF800000 : f32
    %17 = vector.shape_cast %16 : vector<1x8x8xi1> to vector<1x8x8xi1>
    %18 = vector.broadcast %17 : vector<1x8x8xi1> to vector<2x8x8xi1>
    %19 = vector.broadcast %cst_5 : f32 to vector<2x8x8xf32>
    %20 = arith.select %18, %12, %19 : vector<2x8x8xi1>, vector<2x8x8xf32>
    %cst_6 = arith.constant dense<0xFF800000> : vector<2x8xf32>
    %21 = vector.multi_reduction <maximumf>, %20, %cst_6 [2] : vector<2x8x8xf32> to vector<2x8xf32>
    %22 = vector.shape_cast %21 : vector<2x8xf32> to vector<2x8x1xf32>
    %23 = vector.broadcast %22 : vector<2x8x1xf32> to vector<2x8x8xf32>
    %24 = arith.subf %20, %23 : vector<2x8x8xf32>
    %25 = math.exp %24 : vector<2x8x8xf32>
    %cst_7 = arith.constant dense<0.000000e+00> : vector<2x8xf32>
    %26 = vector.multi_reduction <add>, %25, %cst_7 [2] : vector<2x8x8xf32> to vector<2x8xf32>
    %27 = vector.shape_cast %26 : vector<2x8xf32> to vector<2x8x1xf32>
    %28 = tpu.reciprocal %27 {approx = true} : vector<2x8x1xf32> -> vector<2x8x1xf32>
    %29 = vector.broadcast %28 : vector<2x8x1xf32> to vector<2x8x8xf32>
    %30 = arith.mulf %25, %29 : vector<2x8x8xf32>
    %31 = arith.truncf %30 : vector<2x8x8xf32> to vector<2x8x8xbf16>
    "tpu.trace_start"() <{level = 10 : i32, message = "bts,bsh->bth"}> : () -> ()
    %cst_8 = arith.constant dense<0.000000e+00> : vector<2x8x64xf32>
    %32 = tpu.matmul %31, %9, %cst_8 {dimension_numbers = #tpu.dot_dimension_numbers<[2], [1], [1], [2], [0, 0, 0, 1, 1, 2], [0], [0]>} : vector<2x8x8xbf16>, vector<2x8x64xbf16>, vector<2x8x64xf32> -> vector<2x8x64xf32>
    "tpu.trace_stop"() : () -> ()
    %c0_9 = arith.constant 0 : index
    %c0_10 = arith.constant 0 : index
    %c0_11 = arith.constant 0 : index
    %33 = vector.load %arg3[%c0_9, %c0_10, %c0_11] : memref<2x8x64xf32, #tpu.memory_space<vmem>>, vector<2x8x64xf32>
    tpu.vector_store %arg3[%c0_9, %c0_10, %c0_11], %32 {strides = array<i32>} : memref<2x8x64xf32, #tpu.memory_space<vmem>>, vector<2x8x64xf32>,
    return
  }
  func.func @transform_0(%arg0: i32) -> (i32, i32) {
    %c0_i32 = arith.constant 0 : i32
    %c0_i32_0 = arith.constant 0 : i32
    %c0_i32_1 = arith.constant 0 : i32
    return %c0_i32, %c0_i32_0 : i32, i32
  }
  func.func @transform_1(%arg0: i32) -> (i32, i32) {
    %c0_i32 = arith.constant 0 : i32
    %c0_i32_0 = arith.constant 0 : i32
    %c0_i32_1 = arith.constant 0 : i32
    return %c0_i32, %c0_i32_0 : i32, i32
  }
  func.func @transform_2(%arg0: i32) -> (i32, i32, i32) {
    %c0_i32 = arith.constant 0 : i32
    %c0_i32_0 = arith.constant 0 : i32
    %c0_i32_1 = arith.constant 0 : i32
    %c0_i32_2 = arith.constant 0 : i32
    return %c0_i32, %c0_i32_0, %c0_i32_1 : i32, i32, i32
  }
}

</mosaic_0001>

<llo_original>
// kernel: head_forward.1
$region0: #{head_forward.1}
  #allocation0 [shape = 'u32[]', space=smem, size = 0x4, offset = 0x4, fixed_abs, tag = 'smem constant byte address 0x4 - core index']
  #allocation1 [shape = 'u32[144,128]{1,0:T(1,128)}', space=vmem, size = 0x12000, scoped, tag = 'internal scratch']
  %s0 = inlined_call_operand.vmem [shape: bf16[16,384], index: 0, kind: input, shape index: {}]
  %s1 = inlined_call_operand.vmem [shape: bf16[384,192], index: 1, kind: input, shape index: {}]
  %s2 = inlined_call_operand.hbm [shape: f32[2,8,64], index: 2, kind: output, shape index: {}]
  %s3 = sld [smem:[#allocation0]]
  $region18: #{head_forward.1} parent=0
    _
  %s5 = ssub.s32 1, %s3
  %s6 = scalar_select 0, %s5, %s3
  $region1: #{head_forward.1} parent=0
    #allocation2 [shape = 'u8[8192]{0}', space=vmem, size = 0x2000, scoped, tag = 'output window, operand 0, single buffered']
    #allocation3 [shape = 's32[1]{0}', space=sflag, size = 0x4, scoped, tag = 'scoped memory for head_forward.1']
    %7 = vsyncpa [#allocation3], 0
    // Predicated region
    $region2: #{head_forward.1} parent=1 // pred_check
      _
    $region3: #{head_forward.1} parent=1 // pred_check_branch
      %9 = sbr.rel (0) target = $region5
    $region4: #{head_forward.1} parent=1 // pred_region
      _
    $region5: #{head_forward.1} parent=1 // pred_fallthru
      _
    // Predicated region
    $region6: #{head_forward.1} parent=1 // pred_check
      _
    $region7: #{head_forward.1} parent=1 // pred_check_branch
      %11 = sbr.rel (0) target = $region9
    $region8: #{head_forward.1} parent=1 // pred_region
      _
    $region9: #{head_forward.1} parent=1 // pred_fallthru
      _
    %v13 = vld [vmem:[%s0] sm:$0xff]
    %v14 = vld [vmem:[%s0 + $0x8] sm:$0xf]
    %v15 = vld [vmem:[%s0 + $0xc] sm:$0xff]
    %v16 = vld [vmem:[%s0 + $0x14] sm:$0xf]
    %v17 = vld [vmem:[%s1] sm:$0xff]
    %v18 = vld [vmem:[%s1 + $0x8] sm:$0xff]
    %v19 = vld [vmem:[%s1 + $0x10] sm:$0xff]
    %v20 = vld [vmem:[%s1 + $0x18] sm:$0xff]
    %v21 = vld [vmem:[%s1 + $0x20] sm:$0xff]
    %v22 = vld [vmem:[%s1 + $0x28] sm:$0xff]
    %v23 = vld [vmem:[%s1 + $0x30] sm:$0xff]
    %v24 = vld [vmem:[%s1 + $0x38] sm:$0xff]
    %v25 = vld [vmem:[%s1 + $0x40] sm:$0xff]
    %v26 = vld [vmem:[%s1 + $0x48] sm:$0xff]
    %v27 = vld [vmem:[%s1 + $0x50] sm:$0xff]
    %v28 = vld [vmem:[%s1 + $0x58] sm:$0xff]
    %v29 = vld [vmem:[%s1 + $0x60] sm:$0xff]
    %v30 = vld [vmem:[%s1 + $0x68] sm:$0xff]
    %v31 = vld [vmem:[%s1 + $0x70] sm:$0xff]
    %v32 = vld [vmem:[%s1 + $0x78] sm:$0xff]
    %v33 = vld [vmem:[%s1 + $0x80] sm:$0xff]
    %v34 = vld [vmem:[%s1 + $0x88] sm:$0xff]
    %v35 = vld [vmem:[%s1 + $0x90] sm:$0xff]
    %v36 = vld [vmem:[%s1 + $0x98] sm:$0xff]
    %v37 = vld [vmem:[%s1 + $0xa0] sm:$0xff]
    %v38 = vld [vmem:[%s1 + $0xa8] sm:$0xff]
    %v39 = vld [vmem:[%s1 + $0xb0] sm:$0xff]
    %v40 = vld [vmem:[%s1 + $0xb8] sm:$0xff]
    %v41 = vld [vmem:[%s1 + $0xc0] sm:$0xff]
    %v42 = vld [vmem:[%s1 + $0xc8] sm:$0xff]
    %v43 = vld [vmem:[%s1 + $0xd0] sm:$0xff]
    %v44 = vld [vmem:[%s1 + $0xd8] sm:$0xff]
    %v45 = vld [vmem:[%s1 + $0xe0] sm:$0xff]
    %v46 = vld [vmem:[%s1 + $0xe8] sm:$0xff]
    %v47 = vld [vmem:[%s1 + $0xf0] sm:$0xff]
    %v48 = vld [vmem:[%s1 + $0xf8] sm:$0xff]
    %v49 = vld [vmem:[%s1 + $0x100] sm:$0xff]
    %v50 = vld [vmem:[%s1 + $0x108] sm:$0xff]
    %v51 = vld [vmem:[%s1 + $0x110] sm:$0xff]
    %v52 = vld [vmem:[%s1 + $0x118] sm:$0xff]
    %v53 = vld [vmem:[%s1 + $0x120] sm:$0xff]
    %v54 = vld [vmem:[%s1 + $0x128] sm:$0xff]
    %v55 = vld [vmem:[%s1 + $0x130] sm:$0xff]
    %v56 = vld [vmem:[%s1 + $0x138] sm:$0xff]
    %v57 = vld [vmem:[%s1 + $0x140] sm:$0xff]
    %v58 = vld [vmem:[%s1 + $0x148] sm:$0xff]
    %v59 = vld [vmem:[%s1 + $0x150] sm:$0xff]
    %v60 = vld [vmem:[%s1 + $0x158] sm:$0xff]
    %v61 = vld [vmem:[%s1 + $0x160] sm:$0xff]
    %v62 = vld [vmem:[%s1 + $0x168] sm:$0xff]
    %v63 = vld [vmem:[%s1 + $0x170] sm:$0xff]
    %v64 = vld [vmem:[%s1 + $0x178] sm:$0xff]
    %v69 = vunpack.c.l.b16 %v13
    %v70 = vunpack.c.h.b16 %v13
    %v71 = vunpack.c.l.b16 %v14
    %v72 = vunpack.c.l.b16 %v15
    %v73 = vunpack.c.h.b16 %v15
    %v74 = vunpack.c.l.b16 %v16
    %v75 = vpack.c.b16 %v72, %v69
    %v76 = vpack.c.b16 %v73, %v70
    %v77 = vpack.c.b16 %v74, %v71
    %v129 = vunpack.c.l.b16 %v17
    %v130 = vunpack.c.h.b16 %v17
    %v131 = vunpack.c.l.b16 %v18
    %v132 = vunpack.c.h.b16 %v18
    %v133 = vunpack.c.l.b16 %v19
    %v134 = vunpack.c.h.b16 %v19
    %v135 = vunpack.c.l.b16 %v20
    %v136 = vunpack.c.h.b16 %v20
    %v137 = vunpack.c.l.b16 %v21
    %v138 = vunpack.c.h.b16 %v21
    %v139 = vunpack.c.l.b16 %v22
    %v140 = vunpack.c.h.b16 %v22
    %v141 = vunpack.c.l.b16 %v23
    %v142 = vunpack.c.h.b16 %v23
    %v143 = vunpack.c.l.b16 %v24
    %v144 = vunpack.c.h.b16 %v24
    %v145 = vunpack.c.l.b16 %v25
    %v146 = vunpack.c.h.b16 %v25
    %v147 = vunpack.c.l.b16 %v26
    %v148 = vunpack.c.h.b16 %v26
    %v149 = vunpack.c.l.b16 %v27
    %v150 = vunpack.c.h.b16 %v27
    %v151 = vunpack.c.l.b16 %v28
    %v152 = vunpack.c.h.b16 %v28
    %v153 = vunpack.c.l.b16 %v29
    %v154 = vunpack.c.h.b16 %v29
    %v155 = vunpack.c.l.b16 %v30
    %v156 = vunpack.c.h.b16 %v30
    %v157 = vunpack.c.l.b16 %v31
    %v158 = vunpack.c.h.b16 %v31
    %v159 = vunpack.c.l.b16 %v32
    %v160 = vunpack.c.h.b16 %v32
    %v161 = vunpack.c.l.b16 %v33
    %v162 = vunpack.c.h.b16 %v33
    %v163 = vunpack.c.l.b16 %v34
    %v164 = vunpack.c.h.b16 %v34
    %v165 = vunpack.c.l.b16 %v35
    %v166 = vunpack.c.h.b16 %v35
    %v167 = vunpack.c.l.b16 %v36
    %v168 = vunpack.c.h.b16 %v36
    %v169 = vunpack.c.l.b16 %v37
    %v170 = vunpack.c.h.b16 %v37
    %v171 = vunpack.c.l.b16 %v38
    %v172 = vunpack.c.h.b16 %v38
    %v173 = vunpack.c.l.b16 %v39
    %v174 = vunpack.c.h.b16 %v39
    %v175 = vunpack.c.l.b16 %v40
    %v176 = vunpack.c.h.b16 %v40
    %v177 = vunpack.c.l.b16 %v41
    %v178 = vunpack.c.h.b16 %v41
    %v179 = vunpack.c.l.b16 %v42
    %v180 = vunpack.c.h.b16 %v42
    %v181 = vunpack.c.l.b16 %v43
    %v182 = vunpack.c.h.b16 %v43
    %v183 = vunpack.c.l.b16 %v44
    %v184 = vunpack.c.h.b16 %v44
    %v185 = vunpack.c.l.b16 %v45
    %v186 = vunpack.c.h.b16 %v45
    %v187 = vunpack.c.l.b16 %v46
    %v188 = vunpack.c.h.b16 %v46
    %v189 = vunpack.c.l.b16 %v47
    %v190 = vunpack.c.h.b16 %v47
    %v191 = vunpack.c.l.b16 %v48
    %v192 = vunpack.c.h.b16 %v48
    %v193 = vunpack.c.l.b16 %v49
    %v194 = vunpack.c.h.b16 %v49
    %v195 = vunpack.c.l.b16 %v50
    %v196 = vunpack.c.h.b16 %v50
    %v197 = vunpack.c.l.b16 %v51
    %v198 = vunpack.c.h.b16 %v51
    %v199 = vunpack.c.l.b16 %v52
    %v200 = vunpack.c.h.b16 %v52
    %v201 = vunpack.c.l.b16 %v53
    %v202 = vunpack.c.h.b16 %v53
    %v203 = vunpack.c.l.b16 %v54
    %v204 = vunpack.c.h.b16 %v54
    %v205 = vunpack.c.l.b16 %v55
    %v206 = vunpack.c.h.b16 %v55
    %v207 = vunpack.c.l.b16 %v56
    %v208 = vunpack.c.h.b16 %v56
    %v209 = vunpack.c.l.b16 %v57
    %v210 = vunpack.c.h.b16 %v57
    %v211 = vunpack.c.l.b16 %v58
    %v212 = vunpack.c.h.b16 %v58
    %v213 = vunpack.c.l.b16 %v59
    %v214 = vunpack.c.h.b16 %v59
    %v215 = vunpack.c.l.b16 %v60
    %v216 = vunpack.c.h.b16 %v60
    %v217 = vunpack.c.l.b16 %v61
    %v218 = vunpack.c.h.b16 %v61
    %v219 = vunpack.c.l.b16 %v62
    %v220 = vunpack.c.h.b16 %v62
    %v221 = vunpack.c.l.b16 %v63
    %v222 = vunpack.c.h.b16 %v63
    %v223 = vunpack.c.l.b16 %v64
    %v224 = vunpack.c.h.b16 %v64
    %v225 = vpack.c.b16 %v131, %v129
    %v226 = vpack.c.b16 %v132, %v130
    %v227 = vpack.c.b16 %v135, %v133
    %v228 = vpack.c.b16 %v136, %v134
    %v229 = vpack.c.b16 %v139, %v137
    %v230 = vpack.c.b16 %v140, %v138
    %v231 = vpack.c.b16 %v143, %v141
    %v232 = vpack.c.b16 %v144, %v142
    %v233 = vpack.c.b16 %v147, %v145
    %v234 = vpack.c.b16 %v148, %v146
    %v235 = vpack.c.b16 %v151, %v149
    %v236 = vpack.c.b16 %v152, %v150
    %v237 = vpack.c.b16 %v155, %v153
    %v238 = vpack.c.b16 %v156, %v154
    %v239 = vpack.c.b16 %v159, %v157
    %v240 = vpack.c.b16 %v160, %v158
    %v241 = vpack.c.b16 %v163, %v161
    %v242 = vpack.c.b16 %v164, %v162
    %v243 = vpack.c.b16 %v167, %v165
    %v244 = vpack.c.b16 %v168, %v166
    %v245 = vpack.c.b16 %v171, %v169
    %v246 = vpack.c.b16 %v172, %v170
    %v247 = vpack.c.b16 %v175, %v173
    %v248 = vpack.c.b16 %v176, %v174
    %v249 = vpack.c.b16 %v179, %v177
    %v250 = vpack.c.b16 %v180, %v178
    %v251 = vpack.c.b16 %v183, %v181
    %v252 = vpack.c.b16 %v184, %v182
    %v253 = vpack.c.b16 %v187, %v185
    %v254 = vpack.c.b16 %v188, %v186
    %v255 = vpack.c.b16 %v191, %v189
    %v256 = vpack.c.b16 %v192, %v190
    %v257 = vpack.c.b16 %v195, %v193
    %v258 = vpack.c.b16 %v196, %v194
    %v259 = vpack.c.b16 %v199, %v197
    %v260 = vpack.c.b16 %v200, %v198
    %v261 = vpack.c.b16 %v203, %v201
    %v262 = vpack.c.b16 %v204, %v202
    %v263 = vpack.c.b16 %v207, %v205
    %v264 = vpack.c.b16 %v208, %v206
    %v265 = vpack.c.b16 %v211, %v209
    %v266 = vpack.c.b16 %v212, %v210
    %v267 = vpack.c.b16 %v215, %v213
    %v268 = vpack.c.b16 %v216, %v214
    %v269 = vpack.c.b16 %v219, %v217
    %v270 = vpack.c.b16 %v220, %v218
    %v271 = vpack.c.b16 %v223, %v221
    %v272 = vpack.c.b16 %v224, %v222
    %321 = vmatprep.subr.bf16.mxu0 %v226
    %322 = vmatpush1.bf16.msra.mxu0 %v225
    %323 = vmatprep.subr.bf16.mxu0 %v228
    %324 = vmatpush1.bf16.msra.mxu0 %v227
    %325 = vmatprep.subr.bf16.mxu0 %v230
    %326 = vmatpush1.bf16.msra.mxu0 %v229
    %327 = vmatprep.subr.bf16.mxu0 %v232
    %328 = vmatpush1.bf16.msra.mxu0 %v231
    %329 = vmatprep.subr.bf16.mxu0 %v234
    %330 = vmatpush1.bf16.msra.mxu0 %v233
    %331 = vmatprep.subr.bf16.mxu0 %v236
    %332 = vmatpush1.bf16.msra.mxu0 %v235
    %333 = vmatprep.subr.bf16.mxu0 %v238
    %334 = vmatpush1.bf16.msra.mxu0 %v237
    %335 = vmatprep.subr.bf16.mxu0 %v240
    %336 = vmatpush1.bf16.msra.mxu0 %v239
    %337 = vmatprep.subr.bf16.mxu0 %v242
    %338 = vmatpush1.bf16.msra.mxu0 %v241
    %339 = vmatprep.subr.bf16.mxu0 %v244
    %340 = vmatpush1.bf16.msra.mxu0 %v243
    %341 = vmatprep.subr.bf16.mxu0 %v246
    %342 = vmatpush1.bf16.msra.mxu0 %v245
    %343 = vmatprep.subr.bf16.mxu0 %v248
    %344 = vmatpush1.bf16.msra.mxu0 %v247
    %345 = vmatprep.subr.bf16.mxu0 %v250
    %346 = vmatpush1.bf16.msra.mxu0 %v249
    %347 = vmatprep.subr.bf16.mxu0 %v252
    %348 = vmatpush1.bf16.msra.mxu0 %v251
    %349 = vmatprep.subr.bf16.mxu0 %v254
    %350 = vmatpush1.bf16.msra.mxu0 %v253
    %351 = vmatprep.subr.bf16.mxu0 %v256
    %352 = vmatpush1.bf16.msra.mxu0 %v255
    %353 = vmatprep.mubr.bf16.mxu0 %v76
    %354 = vmatmul.mubr.bf16.gmra.mrb[0].mxu0 %v75
    %v355 = vpop.f32.mrb[0].mxu0
    %v356 = vadd.f32 0.0, %v355
    %v357 = vpop.f32.mrb[0].mxu0
    %v358 = vadd.f32 0.0, %v357
    %v359 = vpop.f32.mrb[0].mxu0
    %v360 = vadd.f32 0.0, %v359
    %v361 = vpop.f32.mrb[0].mxu0
    %v362 = vadd.f32 0.0, %v361
    %363 = vdwg.mxu0
    %364 = vmatprep.subr.bf16.mxu0 %v258
    %365 = vmatpush1.bf16.msra.mxu0 %v257
    %366 = vmatprep.subr.bf16.mxu0 %v260
    %367 = vmatpush1.bf16.msra.mxu0 %v259
    %368 = vmatprep.subr.bf16.mxu0 %v262
    %369 = vmatpush1.bf16.msra.mxu0 %v261
    %370 = vmatprep.subr.bf16.mxu0 %v264
    %371 = vmatpush1.bf16.msra.mxu0 %v263
    %372 = vmatprep.subr.bf16.mxu0 %v266
    %373 = vmatpush1.bf16.msra.mxu0 %v265
    %374 = vmatprep.subr.bf16.mxu0 %v268
    %375 = vmatpush1.bf16.msra.mxu0 %v267
    %376 = vmatprep.subr.bf16.mxu0 %v270
    %377 = vmatpush1.bf16.msra.mxu0 %v269
    %378 = vmatprep.subr.bf16.mxu0 %v272
    %379 = vmatpush1.bf16.msra.mxu0 %v271
    %380 = vmatprep.subr.bf16.mxu0 0
    %381 = vmatpush1.bf16.msra.mxu0 0
    %382 = vmatprep.subr.bf16.mxu0 0
    %383 = vmatpush1.bf16.msra.mxu0 0
    %384 = vmatprep.subr.bf16.mxu0 0
    %385 = vmatpush1.bf16.msra.mxu0 0
    %386 = vmatprep.subr.bf16.mxu0 0
    %387 = vmatpush1.bf16.msra.mxu0 0
    %388 = vmatprep.subr.bf16.mxu0 0
    %389 = vmatpush1.bf16.msra.mxu0 0
    %390 = vmatprep.subr.bf16.mxu0 0
    %391 = vmatpush1.bf16.msra.mxu0 0
    %392 = vmatprep.subr.bf16.mxu0 0
    %393 = vmatpush1.bf16.msra.mxu0 0
    %394 = vmatprep.subr.bf16.mxu0 0
    %395 = vmatpush1.bf16.msra.mxu0 0
    %396 = vmatprep.mubr.bf16.mxu0 0
    %397 = vmatmul.mubr.bf16.gmra.mrb[0].mxu0 %v77
    %v398 = vpop.f32.mrb[0].mxu0
    %v399 = vadd.f32 %v356, %v398
    %v400 = vpop.f32.mrb[0].mxu0
    %v401 = vadd.f32 %v358, %v400
    %v402 = vpop.f32.mrb[0].mxu0
    %v403 = vadd.f32 %v360, %v402
    %v404 = vpop.f32.mrb[0].mxu0
    %v405 = vadd.f32 %v362, %v404
    %406 = vdwg.mxu0
    %v407 = vpack.c.bf16 %v399, %v399
    %v408 = vpack.c.bf16 %v403, %v403
    %v409 = vpack.c.bf16 %v401, %v401
    %v410 = vpack.c.bf16 %v405, %v405
    %412 = vrot.lane.b32.xlu0 %v407, 64
    %v413 = vpop.permute.xlu0 %412
    %vm414 = vcmask 523264
    %v416 = vsel %vm414, %v407, 0
    %v419 = vsel %vm414, %v413, 0
    %421 = vmatprep.subr.bf16.mxu0 0
    %422 = vmatpush1.bf16.xpose.msra.mxu0 %v419
    %423 = vmatprep.subr.bf16.mxu0 0
    %424 = vmatpush1.bf16.xpose.msra.mxu0 0
    %425 = vmatprep.subr.bf16.mxu0 0
    %426 = vmatpush1.bf16.xpose.msra.mxu0 0
    %427 = vmatprep.subr.bf16.mxu0 0
    %428 = vmatpush1.bf16.xpose.msra.mxu0 0
    %429 = vmatprep.subr.bf16.mxu0 0
    %430 = vmatpush1.bf16.xpose.msra.mxu0 0
    %431 = vmatprep.subr.bf16.mxu0 0
    %432 = vmatpush1.bf16.xpose.msra.mxu0 0
    %433 = vmatprep.subr.bf16.mxu0 0
    %434 = vmatpush1.bf16.xpose.msra.mxu0 0
    %435 = vmatprep.subr.bf16.mxu0 0
    %436 = vmatpush1.bf16.xpose.msra.mxu0 0
    %437 = vmatprep.subr.bf16.mxu0 0
    %438 = vmatpush1.bf16.xpose.msra.mxu0 0
    %439 = vmatprep.subr.bf16.mxu0 0
    %440 = vmatpush1.bf16.xpose.msra.mxu0 0
    %441 = vmatprep.subr.bf16.mxu0 0
    %442 = vmatpush1.bf16.xpose.msra.mxu0 0
    %443 = vmatprep.subr.bf16.mxu0 0
    %444 = vmatpush1.bf16.xpose.msra.mxu0 0
    %445 = vmatprep.subr.bf16.mxu0 0
    %446 = vmatpush1.bf16.xpose.msra.mxu0 0
    %447 = vmatprep.subr.bf16.mxu0 0
    %448 = vmatpush1.bf16.xpose.msra.mxu0 0
    %449 = vmatprep.subr.bf16.mxu0 0
    %450 = vmatpush1.bf16.xpose.msra.mxu0 0
    %451 = vmatprep.subr.bf16.mxu0 0
    %452 = vmatpush1.bf16.xpose.msra.mxu0 0
    %453 = vmatprep.mubr.bf16.mxu0 0
    %454 = vmatmul.mubr.bf16.gmra.mrb[0].mxu0 %v416
    %v455 = vpop.f32.mrb[0].mxu0
    %v456 = vadd.f32 0.0, %v455
    %v457 = vpop.f32.mrb[0].mxu0
    %v458 = vpop.f32.mrb[0].mxu0
    %v459 = vpop.f32.mrb[0].mxu0
    %460 = vdwg.mxu0
    %462 = vrot.lane.b32.xlu0 %v408, 64
    %v463 = vpop.permute.xlu0 %462
    %v465 = vsel %vm414, %v408, 0
    %v468 = vsel %vm414, %v463, 0
    %470 = vmatprep.subr.bf16.mxu0 0
    %471 = vmatpush1.bf16.xpose.msra.mxu0 %v468
    %472 = vmatprep.subr.bf16.mxu0 0
    %473 = vmatpush1.bf16.xpose.msra.mxu0 0
    %474 = vmatprep.subr.bf16.mxu0 0
    %475 = vmatpush1.bf16.xpose.msra.mxu0 0
    %476 = vmatprep.subr.bf16.mxu0 0
    %477 = vmatpush1.bf16.xpose.msra.mxu0 0
    %478 = vmatprep.subr.bf16.mxu0 0
    %479 = vmatpush1.bf16.xpose.msra.mxu0 0
    %480 = vmatprep.subr.bf16.mxu0 0
    %481 = vmatpush1.bf16.xpose.msra.mxu0 0
    %482 = vmatprep.subr.bf16.mxu0 0
    %483 = vmatpush1.bf16.xpose.msra.mxu0 0
    %484 = vmatprep.subr.bf16.mxu0 0
    %485 = vmatpush1.bf16.xpose.msra.mxu0 0
    %486 = vmatprep.subr.bf16.mxu0 0
    %487 = vmatpush1.bf16.xpose.msra.mxu0 0
    %488 = vmatprep.subr.bf16.mxu0 0
    %489 = vmatpush1.bf16.xpose.msra.mxu0 0
    %490 = vmatprep.subr.bf16.mxu0 0
    %491 = vmatpush1.bf16.xpose.msra.mxu0 0
    %492 = vmatprep.subr.bf16.mxu0 0
    %493 = vmatpush1.bf16.xpose.msra.mxu0 0
    %494 = vmatprep.subr.bf16.mxu0 0
    %495 = vmatpush1.bf16.xpose.msra.mxu0 0
    %496 = vmatprep.subr.bf16.mxu0 0
    %497 = vmatpush1.bf16.xpose.msra.mxu0 0
    %498 = vmatprep.subr.bf16.mxu0 0
    %499 = vmatpush1.bf16.xpose.msra.mxu0 0
    %500 = vmatprep.subr.bf16.mxu0 0
    %501 = vmatpush1.bf16.xpose.msra.mxu0 0
    %502 = vmatprep.mubr.bf16.mxu0 0
    %503 = vmatmul.mubr.bf16.gmra.mrb[0].mxu0 %v465
    %v504 = vpop.f32.mrb[0].mxu0
    %v505 = vadd.f32 0.0, %v504
    %v506 = vpop.f32.mrb[0].mxu0
    %v507 = vpop.f32.mrb[0].mxu0
    %v508 = vpop.f32.mrb[0].mxu0
    %509 = vdwg.mxu0
    %v510 = vmul.f32 %v456, 0.05103104
    %v511 = vmul.f32 %v505, 0.05103104
    %v512 = vlaneseq
    %v513 = vshrl.u32 %v512, 7
    %v514 = vlaneseq
    %v515 = vand.u32 %v514, 127
    %vm516 = vcmp.ge.s32.totalorder %v513, %v515
    %v517 = vsel %vm516, 1, 0
    %vm518 = vcmp.eq.s32.totalorder %v517, 1
    %v519 = vsel %vm518, %v510, -inf
    %v520 = vsel %vm518, %v511, -inf
    %vm521 = vcmask 64512
    %v522 = vsel %vm521, %v519, -inf
    %523 = vmax.xlane.f32.xlu0 %v522
    %v524 = vpop.xlane.xlu0 %523
    %v525 = vsel %vm521, %v520, -inf
    %526 = vmax.xlane.f32.xlu0 %v525
    %v527 = vpop.xlane.xlu0 %526
    %v528 = vsub.f32 %v519, %v524
    %v529 = vsub.f32 %v520, %v527
    %v530 = vmul.f32 %v528, 1.442695
    %v531 = vpow.pop %v530
    %v532 = vmul.f32 %v529, 1.442695
    %v533 = vpow.pop %v532
    %v534 = vsel %vm521, %v531, 0.0
    %535 = vadd.xlane.f32.xlu0 %v534
    %v536 = vpop.xlane.xlu0 %535
    %v537 = vsel %vm521, %v533, 0.0
    %538 = vadd.xlane.f32.xlu0 %v537
    %v539 = vpop.xlane.xlu0 %538
    %v540 = vrcp.pop %v536
    %v541 = vrcp.pop %v539
    %v542 = vmul.f32 %v531, %v540
    %v543 = vmul.f32 %v533, %v541
    %v544 = vpack.c.bf16 %v542, %v542
    %v545 = vpack.c.bf16 %v543, %v543
    %v547 = vsel %vm521, %v544, 0
    %vm549 = vcmask 1043456
    %v551 = vsel %vm549, %v409, 0
    %553 = vmatprep.subr.bf16.mxu0 0
    %554 = vmatpush1.bf16.msra.mxu0 %v551
    %555 = vmatprep.subr.bf16.mxu0 0
    %556 = vmatpush1.bf16.msra.mxu0 0
    %557 = vmatprep.subr.bf16.mxu0 0
    %558 = vmatpush1.bf16.msra.mxu0 0
    %559 = vmatprep.subr.bf16.mxu0 0
    %560 = vmatpush1.bf16.msra.mxu0 0
    %561 = vmatprep.subr.bf16.mxu0 0
    %562 = vmatpush1.bf16.msra.mxu0 0
    %563 = vmatprep.subr.bf16.mxu0 0
    %564 = vmatpush1.bf16.msra.mxu0 0
    %565 = vmatprep.subr.bf16.mxu0 0
    %566 = vmatpush1.bf16.msra.mxu0 0
    %567 = vmatprep.subr.bf16.mxu0 0
    %568 = vmatpush1.bf16.msra.mxu0 0
    %569 = vmatprep.subr.bf16.mxu0 0
    %570 = vmatpush1.bf16.msra.mxu0 0
    %571 = vmatprep.subr.bf16.mxu0 0
    %572 = vmatpush1.bf16.msra.mxu0 0
    %573 = vmatprep.subr.bf16.mxu0 0
    %574 = vmatpush1.bf16.msra.mxu0 0
    %575 = vmatprep.subr.bf16.mxu0 0
    %576 = vmatpush1.bf16.msra.mxu0 0
    %577 = vmatprep.subr.bf16.mxu0 0
    %578 = vmatpush1.bf16.msra.mxu0 0
    %579 = vmatprep.subr.bf16.mxu0 0
    %580 = vmatpush1.bf16.msra.mxu0 0
    %581 = vmatprep.subr.bf16.mxu0 0
    %582 = vmatpush1.bf16.msra.mxu0 0
    %583 = vmatprep.subr.bf16.mxu0 0
    %584 = vmatpush1.bf16.msra.mxu0 0
    %585 = vmatprep.mubr.bf16.mxu0 0
    %586 = vmatmul.mubr.bf16.gmra.mrb[0].mxu0 %v547
    %v587 = vpop.f32.mrb[0].mxu0
    %v588 = vadd.f32 0.0, %v587
    %v589 = vpop.f32.mrb[0].mxu0
    %v590 = vpop.f32.mrb[0].mxu0
    %v591 = vpop.f32.mrb[0].mxu0
    %592 = vdwg.mxu0
    %v594 = vsel %vm521, %v545, 0
    %v597 = vsel %vm549, %v410, 0
    %599 = vmatprep.subr.bf16.mxu0 0
    %600 = vmatpush1.bf16.msra.mxu0 %v597
    %601 = vmatprep.subr.bf16.mxu0 0
    %602 = vmatpush1.bf16.msra.mxu0 0
    %603 = vmatprep.subr.bf16.mxu0 0
    %604 = vmatpush1.bf16.msra.mxu0 0
    %605 = vmatprep.subr.bf16.mxu0 0
    %606 = vmatpush1.bf16.msra.mxu0 0
    %607 = vmatprep.subr.bf16.mxu0 0
    %608 = vmatpush1.bf16.msra.mxu0 0
    %609 = vmatprep.subr.bf16.mxu0 0
    %610 = vmatpush1.bf16.msra.mxu0 0
    %611 = vmatprep.subr.bf16.mxu0 0
    %612 = vmatpush1.bf16.msra.mxu0 0
    %613 = vmatprep.subr.bf16.mxu0 0
    %614 = vmatpush1.bf16.msra.mxu0 0
    %615 = vmatprep.subr.bf16.mxu0 0
    %616 = vmatpush1.bf16.msra.mxu0 0
    %617 = vmatprep.subr.bf16.mxu0 0
    %618 = vmatpush1.bf16.msra.mxu0 0
    %619 = vmatprep.subr.bf16.mxu0 0
    %620 = vmatpush1.bf16.msra.mxu0 0
    %621 = vmatprep.subr.bf16.mxu0 0
    %622 = vmatpush1.bf16.msra.mxu0 0
    %623 = vmatprep.subr.bf16.mxu0 0
    %624 = vmatpush1.bf16.msra.mxu0 0
    %625 = vmatprep.subr.bf16.mxu0 0
    %626 = vmatpush1.bf16.msra.mxu0 0
    %627 = vmatprep.subr.bf16.mxu0 0
    %628 = vmatpush1.bf16.msra.mxu0 0
    %629 = vmatprep.subr.bf16.mxu0 0
    %630 = vmatpush1.bf16.msra.mxu0 0
    %631 = vmatprep.mubr.bf16.mxu0 0
    %632 = vmatmul.mubr.bf16.gmra.mrb[0].mxu0 %v594
    %v633 = vpop.f32.mrb[0].mxu0
    %v634 = vadd.f32 0.0, %v633
    %v635 = vpop.f32.mrb[0].mxu0
    %v636 = vpop.f32.mrb[0].mxu0
    %v637 = vpop.f32.mrb[0].mxu0
    %638 = vdwg.mxu0
    %639 = vst.msk [vmem:[#allocation2] sm:$0xff] %vm414, %v588
    %640 = vst.msk [vmem:[#allocation2 + $0x8] sm:$0xff] %vm414, %v634
    // Predicated region
    $region10: #{head_forward.1} parent=1 // pred_check
      _
    $region11: #{head_forward.1} parent=1 // pred_check_branch
      %642 = sbr.rel (0) target = $region13
    $region12: #{head_forward.1} parent=1 // pred_region
      %s644 = ssub.s32 256, 256
      %645 = vsyncadd [#allocation3], %s644
      %s646 = sshll.u32 [#allocation2], 4
      %s647 = int_to_ptr.vmem [resolvable:$true] %s646
      %652 = dma.vmem_to_hbm [thread:$0]  %s647, 256, %s2, [#allocation3], 128, 128, 8
    $region13: #{head_forward.1} parent=1 // pred_fallthru
      _
    // Predicated region
    $region14: #{head_forward.1} parent=1 // pred_check
      _
    $region15: #{head_forward.1} parent=1 // pred_check_branch
      %654 = sbr.rel (0) target = $region17
    $region16: #{head_forward.1} parent=1 // pred_region
      %655 = dma.done [#allocation3], 256
    $region17: #{head_forward.1} parent=1 // pred_fallthru
      _
    %656 = vsyncpa [#allocation3], 1

</llo_original>
